<compile_context>
chip_gen: v5e
topology: v5e:2x2
jax: 0.10.0
libtpu: 0.0.40
codegen_flags: <defaults>
</compile_context>

<pallas_src>
import functools

import jax
import jax.numpy as jnp
from jax import lax
from jax.experimental import pallas as pl
from jax.experimental.pallas import tpu as pltpu

_LANE = 128
_SUBLANE = 8
_NEG_BIG = -1e30  # finite "-inf" for padded class columns: exp() == 0, no NaNs


# --------------------------------------------------------------------------
# Kernels
# --------------------------------------------------------------------------
def _resident_kernel(x_ref, w_ref, b_ref, o_ref):
    """Fused x @ W + b -> log_softmax; W (D_pad, T_pad) is VMEM-resident.

    x_ref: (TB, D_pad)   batch tile (native dtype, fed straight to the MXU)
    w_ref: (D_pad, T_pad) pre-transposed weight, resident across batch steps
    b_ref: (1, T_pad)     bias row (f32), resident
    o_ref: (TB, T_pad)    log-softmax output tile
    """
    logits = jnp.dot(x_ref[...], w_ref[...],
                     preferred_element_type=jnp.float32)
    logits = logits + b_ref[...]                      # (TB, T_pad), f32

    # Numerically stable log-softmax along the class axis (PyTorch dim=1).
    m = jnp.max(logits, axis=-1, keepdims=True)
    shifted = logits - m
    lse = jnp.log(jnp.sum(jnp.exp(shifted), axis=-1, keepdims=True))
    o_ref[...] = (shifted - lse).astype(o_ref.dtype)


def _t_tiled_kernel(x_ref, w_ref, b_ref, logits_ref, lse_ref, m_sc, l_sc):
    """Class-axis-tiled fallback: emit f32 logits tiles + online log-sum-exp.

    Grid = (batch tiles, T tiles); T axis is innermost ("arbitrary").
    """
    j = pl.program_id(1)

    @pl.when(j == 0)
    def _():
        m_sc[...] = jnp.full_like(m_sc, -jnp.inf)
        l_sc[...] = jnp.zeros_like(l_sc)

    logits = jnp.dot(x_ref[...], w_ref[...],
                     preferred_element_type=jnp.float32)
    logits = logits + b_ref[...]                      # (TB, TT), f32
    logits_ref[...] = logits

    # Online (flash-style) log-sum-exp update over the class tiles.
    m_new = jnp.maximum(m_sc[...], jnp.max(logits, axis=-1, keepdims=True))
    l_sc[...] = l_sc[...] * jnp.exp(m_sc[...] - m_new) + jnp.sum(
        jnp.exp(logits - m_new), axis=-1, keepdims=True)
    m_sc[...] = m_new

    @pl.when(j == pl.num_programs(1) - 1)
    def _():
        lse_ref[...] = m_sc[...] + jnp.log(l_sc[...])


# --------------------------------------------------------------------------
# Sizing helpers (plain Python, static)
# --------------------------------------------------------------------------
def _round_up(x, m):
    return ((x + m - 1) // m) * m


def _vmem_limits():
    """Generation-aware scoped-VMEM limit + tile-planning budget."""
    phys = 64 * 1024 * 1024                    # conservative default (v7x)
    try:
        phys = int(pltpu.get_tpu_info().vmem_capacity_bytes)
    except Exception:
        pass
    # ~80% of physical, with headroom for compiler-internal scratch.
    limit = max(32 * 1024 * 1024, min(int(phys * 0.8), phys - 8 * 1024 * 1024))
    budget = limit - 2 * 1024 * 1024
    return limit, budget


def _pick_resident_tile(B, d_pad, t_pad, x_bytes, out_bytes, budget):
    """Batch tile for the resident-weight path, or None if W doesn't fit."""
    # Pallas double-buffers every input by default, even with a constant
    # index_map, so the resident weight/bias cost 2x their raw size.
    resident = 2 * (t_pad * d_pad * x_bytes + t_pad * 4)
    per_row = 2 * (d_pad * x_bytes + t_pad * out_bytes)   # 2x-buffered x + out
    avail = budget - resident
    if avail < per_row * _SUBLANE:
        return None                                        # -> T-tiled fallback
    tb = avail // per_row
    # Keep >= 4 grid steps when the batch allows: pipelining overlaps x-in /
    # out-writeback with MXU work, and >= 2 programs enables v7x megacore
    # sharding of the "parallel" batch axis.
    tb = min(tb, max(_SUBLANE, _round_up(pl.cdiv(B, 4), _SUBLANE)), 1024)
    tb = max(_SUBLANE, (tb // _SUBLANE) * _SUBLANE)
    if tb >= 256:                                          # MXU-friendly M tiles
        tb = (tb // 256) * 256
    return tb


def _pick_t_tiled_tiles(B, d_pad, t_pad, x_bytes, budget):
    """(batch tile, class tile) for the online-LSE fallback path."""
    tb = min(max(_SUBLANE, _round_up(pl.cdiv(B, 4), _SUBLANE)), 256)
    tt = min(2048, t_pad)

    def need(tb_, tt_):
        return (2 * tb_ * d_pad * x_bytes      # x tile (double-buffered)
                + 2 * d_pad * tt_ * x_bytes    # weight tile (double-buffered)
                + 2 * tt_ * 4                  # bias tile
                + 2 * tb_ * tt_ * 4            # f32 logits out tile
                + 6 * tb_ * 4)                 # lse out + m/l scratch

    while need(tb, tt) > budget and tt > 256:
        tt //= 2
    while need(tb, tt) > budget and tb > _SUBLANE:
        tb = max(_SUBLANE, (tb // 2 // _SUBLANE) * _SUBLANE)
    return tb, tt


# --------------------------------------------------------------------------
# pallas_call wrappers
# --------------------------------------------------------------------------
def _pad_operands(x, weight, bias, d_pad, t_pad):
    B, D = x.shape
    T = weight.shape[0]
    x_p = x if d_pad == D else jnp.zeros((B, d_pad), x.dtype).at[:, :D].set(x)
    # One-time transpose to (D, T): amortized over all batch tiles since the
    # weight is DMA'd once; avoids any in-kernel re-layout of the operand.
    w_t = jnp.zeros((d_pad, t_pad), weight.dtype).at[:D, :T].set(weight.T)
    b2d = jnp.full((1, t_pad), _NEG_BIG, jnp.float32).at[0, :T].set(
        bias.astype(jnp.float32))
    return x_p, w_t, b2d


@functools.partial(jax.jit, static_argnames=(
    "tb", "t_pad", "d_pad", "vmem_limit", "out_dtype"))
def _forward_resident(x, weight, bias, *, tb, t_pad, d_pad, vmem_limit,
                      out_dtype):
    B, _ = x.shape
    T = weight.shape[0]
    odt = jnp.dtype(out_dtype)
    x_p, w_t, b2d = _pad_operands(x, weight, bias, d_pad, t_pad)

    # NOTE: when B % tb != 0 the last grid step computes on out-of-range rows;
    # log-softmax is row-wise so valid rows are unaffected and Pallas only
    # writes back the in-range part of the output block.
    out = pl.pallas_call(
        _resident_kernel,
        out_shape=jax.ShapeDtypeStruct((B, t_pad), odt),
        grid=(pl.cdiv(B, tb),),
        in_specs=[
            pl.BlockSpec((tb, d_pad), lambda i: (i, 0)),      # batch-tiled x
            pl.BlockSpec((d_pad, t_pad), lambda i: (0, 0)),   # resident weight
            pl.BlockSpec((1, t_pad), lambda i: (0, 0)),       # resident bias
        ],
        out_specs=pl.BlockSpec((tb, t_pad), lambda i: (i, 0)),
        compiler_params=pltpu.CompilerParams(
            dimension_semantics=("parallel",),                # megacore on v7x
            vmem_limit_bytes=vmem_limit),
    )(x_p, w_t, b2d)

    return out[:, :T]


@functools.partial(jax.jit, static_argnames=(
    "tb", "tt", "t_pad", "d_pad", "vmem_limit", "out_dtype"))
def _forward_t_tiled(x, weight, bias, *, tb, tt, t_pad, d_pad, vmem_limit,
                     out_dtype):
    B, _ = x.shape
    T = weight.shape[0]
    odt = jnp.dtype(out_dtype)
    x_p, w_t, b2d = _pad_operands(x, weight, bias, d_pad, t_pad)

    logits, lse = pl.pallas_call(
        _t_tiled_kernel,
        out_shape=(jax.ShapeDtypeStruct((B, t_pad), jnp.float32),
                   jax.ShapeDtypeStruct((B, 1), jnp.float32)),
        grid=(pl.cdiv(B, tb), t_pad // tt),
        in_specs=[
            pl.BlockSpec((tb, d_pad), lambda i, j: (i, 0)),
            pl.BlockSpec((d_pad, tt), lambda i, j: (0, j)),
            pl.BlockSpec((1, tt), lambda i, j: (0, j)),
        ],
        out_specs=[
            pl.BlockSpec((tb, tt), lambda i, j: (i, j)),
            pl.BlockSpec((tb, 1), lambda i, j: (i, 0)),
        ],
        scratch_shapes=[pltpu.VMEM((tb, 1), jnp.float32),     # running max
                        pltpu.VMEM((tb, 1), jnp.float32)],    # running sum-exp
        compiler_params=pltpu.CompilerParams(
            dimension_semantics=("parallel", "arbitrary"),
            vmem_limit_bytes=vmem_limit),
    )(x_p, w_t, b2d)

    # Cheap elementwise finish; the heavy matmul + reductions stayed in-kernel.
    return (logits[:, :T] - lse).astype(odt)


def softmax_layer_forward(x, weight, bias, *, out_dtype=None,
                          force_t_tiled=False, force_tt=None):
    """x: (B, D); weight: (T, D) (PyTorch nn.Linear layout); bias: (T,)."""
    B, D = x.shape
    T = weight.shape[0]
    odt = jnp.dtype(x.dtype if out_dtype is None else out_dtype)

    d_pad = _round_up(D, _LANE)
    t_align = 256 if T > 128 else _LANE      # v6e/v7x MXU is 2x256x256
    t_pad = _round_up(T, t_align)
    x_bytes = jnp.dtype(x.dtype).itemsize
    vmem_limit, budget = _vmem_limits()

    tb = None if force_t_tiled else _pick_resident_tile(
        B, d_pad, t_pad, x_bytes, odt.itemsize, budget)
    if tb is not None:
        return _forward_resident(
            x, weight, bias, tb=tb, t_pad=t_pad, d_pad=d_pad,
            vmem_limit=vmem_limit, out_dtype=odt.name)

    # Weight too large to keep VMEM-resident (or forced): tile the class axis
    # with an online log-sum-exp.
    tb, tt = _pick_t_tiled_tiles(B, d_pad, t_pad, x_bytes, budget)
    if force_tt is not None:
        tt = force_tt
    t_pad = _round_up(t_pad, tt)             # make tt divide t_pad exactly
    return _forward_t_tiled(
        x, weight, bias, tb=tb, tt=tt, t_pad=t_pad, d_pad=d_pad,
        vmem_limit=vmem_limit, out_dtype=odt.name)


# --------------------------------------------------------------------------
# Self-test
# --------------------------------------------------------------------------
if __name__ == "__main__":
    key = jax.random.PRNGKey(0)
    keys = jax.random.split(key, 6)

    # --- Test 1: module-sized shapes (resident-weight fast path) ---
    batch, model_out_dim, targ_size = 8, 32, 16
    x = jax.random.normal(keys[0], (batch, model_out_dim), dtype=jnp.float32)
    bound = 1.0 / (model_out_dim ** 0.5)
    weight = jax.random.uniform(keys[1], (targ_size, model_out_dim),
                                minval=-bound, maxval=bound, dtype=jnp.float32)
    bias = jax.random.uniform(keys[2], (targ_size,),
                              minval=-bound, maxval=bound, dtype=jnp.float32)

    out = jax.block_until_ready(softmax_layer_forward(x, weight, bias))
    ref = jax.nn.log_softmax(
        jnp.dot(x, weight.T, precision=lax.Precision.HIGHEST) + bias, axis=1)
    assert out.shape == (batch, targ_size)
    assert jnp.allclose(out, ref, atol=1e-5, rtol=1e-5)

    # --- Test 2: force the class-tiled online-LSE fallback path ---
    b2, d2, t2 = 16, 40, 600
    x2 = jax.random.normal(keys[3], (b2, d2), dtype=jnp.float32)
    bd2 = 1.0 / (d2 ** 0.5)
    w2 = jax.random.uniform(keys[4], (t2, d2),
                            minval=-bd2, maxval=bd2, dtype=jnp.float32)
    bs2 = jax.random.uniform(keys[5], (t2,),
                             minval=-bd2, maxval=bd2, dtype=jnp.float32)
    out2 = jax.block_until_ready(
        softmax_layer_forward(x2, w2, bs2, force_t_tiled=True, force_tt=256))
    ref2 = jax.nn.log_softmax(
        jnp.dot(x2, w2.T, precision=lax.Precision.HIGHEST) + bs2, axis=1)
    assert out2.shape == (b2, t2)
    assert jnp.allclose(out2, ref2, atol=1e-4, rtol=1e-4)

    print("KERNEL_OK")
</pallas_src>

<mosaic_0001>
module attributes {stable_mosaic.version = 11 : i64} {
  func.func @_resident_kernel(%arg0: i32, %arg1: memref<8x128xf32, #tpu.memory_space<vmem>>, %arg2: memref<128x128xf32, #tpu.memory_space<vmem>>, %arg3: memref<1x128xf32, #tpu.memory_space<vmem>>, %arg4: memref<8x128xf32, #tpu.memory_space<vmem>>) attributes {dimension_semantics = [#tpu.dimension_semantics<parallel>], iteration_bounds = array<i64: 1>, scalar_prefetch = 0 : i64, scratch_operands = 0 : i64, tpu.core_type = #tpu.core_type<tc>, window_params = [{transform_indices = @transform_0, window_bounds = array<i64: 8, 128>}, {pipeline_mode = #tpu.pipeline_mode<synchronous>, transform_indices = @transform_1, window_bounds = array<i64: 128, 128>}, {pipeline_mode = #tpu.pipeline_mode<synchronous>, transform_indices = @transform_2, window_bounds = array<i64: 1, 128>}, {transform_indices = @transform_3, window_bounds = array<i64: 8, 128>}]} {
    %c0 = arith.constant 0 : index
    %c0_0 = arith.constant 0 : index
    %0 = vector.load %arg1[%c0, %c0_0] : memref<8x128xf32, #tpu.memory_space<vmem>>, vector<8x128xf32>
    %c0_1 = arith.constant 0 : index
    %c0_2 = arith.constant 0 : index
    %1 = vector.load %arg2[%c0_1, %c0_2] : memref<128x128xf32, #tpu.memory_space<vmem>>, vector<128x128xf32>
    %cst = arith.constant dense<0.000000e+00> : vector<8x128xf32>
    %2 = tpu.matmul %0, %1, %cst {dimension_numbers = #tpu.dot_dimension_numbers<[1], [0], [0], [1], [0, 0, 1, 1], [], []>} : vector<8x128xf32>, vector<128x128xf32>, vector<8x128xf32> -> vector<8x128xf32>
    %c0_3 = arith.constant 0 : index
    %c0_4 = arith.constant 0 : index
    %3 = vector.load %arg3[%c0_3, %c0_4] : memref<1x128xf32, #tpu.memory_space<vmem>>, vector<1x128xf32>
    %4 = vector.broadcast %3 : vector<1x128xf32> to vector<8x128xf32>
    %5 = arith.addf %2, %4 : vector<8x128xf32>
    %cst_5 = arith.constant dense<0xFF800000> : vector<8xf32>
    %6 = vector.multi_reduction <maximumf>, %5, %cst_5 [1] : vector<8x128xf32> to vector<8xf32>
    %7 = vector.shape_cast %6 : vector<8xf32> to vector<8x1xf32>
    %8 = vector.broadcast %7 : vector<8x1xf32> to vector<8x128xf32>
    %9 = arith.subf %5, %8 : vector<8x128xf32>
    %10 = math.exp %9 : vector<8x128xf32>
    %cst_6 = arith.constant dense<0.000000e+00> : vector<8xf32>
    %11 = vector.multi_reduction <add>, %10, %cst_6 [1] : vector<8x128xf32> to vector<8xf32>
    %12 = vector.shape_cast %11 : vector<8xf32> to vector<8x1xf32>
    %13 = math.log %12 : vector<8x1xf32>
    %14 = vector.broadcast %13 : vector<8x1xf32> to vector<8x128xf32>
    %15 = arith.subf %9, %14 : vector<8x128xf32>
    %c0_7 = arith.constant 0 : index
    %c0_8 = arith.constant 0 : index
    %16 = vector.load %arg4[%c0_7, %c0_8] : memref<8x128xf32, #tpu.memory_space<vmem>>, vector<8x128xf32>
    tpu.vector_store %arg4[%c0_7, %c0_8], %15 {strides = array<i32>} : memref<8x128xf32, #tpu.memory_space<vmem>>, vector<8x128xf32>,
    return
  }
  func.func @transform_0(%arg0: i32) -> (i32, i32) {
    %c0_i32 = arith.constant 0 : i32
    %c0_i32_0 = arith.constant 0 : i32
    return %arg0, %c0_i32 : i32, i32
  }
  func.func @transform_1(%arg0: i32) -> (i32, i32) {
    %c0_i32 = arith.constant 0 : i32
    %c0_i32_0 = arith.constant 0 : i32
    %c0_i32_1 = arith.constant 0 : i32
    return %c0_i32, %c0_i32_0 : i32, i32
  }
  func.func @transform_2(%arg0: i32) -> (i32, i32) {
    %c0_i32 = arith.constant 0 : i32
    %c0_i32_0 = arith.constant 0 : i32
    %c0_i32_1 = arith.constant 0 : i32
    return %c0_i32, %c0_i32_0 : i32, i32
  }
  func.func @transform_3(%arg0: i32) -> (i32, i32) {
    %c0_i32 = arith.constant 0 : i32
    %c0_i32_0 = arith.constant 0 : i32
    return %arg0, %c0_i32 : i32, i32
  }
}

</mosaic_0001>

<llo_original>
// kernel: _forward_resident.1
$region0: #{_forward_resident.1}
  #allocation0 [shape = 'u32[]', space=smem, size = 0x4, offset = 0x4, fixed_abs, tag = 'smem constant byte address 0x4 - core index']
  #allocation1 [shape = 'u32[72,128]{1,0:T(1,128)}', space=vmem, size = 0x9000, scoped, tag = 'internal scratch']
  %s0 = inlined_call_operand.vmem [shape: f32[8,128], index: 0, kind: input, shape index: {}]
  %s1 = inlined_call_operand.vmem [shape: f32[128,128], index: 1, kind: input, shape index: {}]
  %s2 = inlined_call_operand.vmem [shape: f32[1,128], index: 2, kind: input, shape index: {}]
  %s3 = inlined_call_operand.hbm [shape: f32[8,128], index: 3, kind: output, shape index: {}]
  %s4 = sld [smem:[#allocation0]]
  $region22: #{_forward_resident.1} parent=0
    _
  %s6 = ssub.s32 1, %s4
  %s7 = scalar_select 0, %s6, %s4
  $region1: #{_forward_resident.1} parent=0
    #allocation2 [shape = 'u8[4096]{0}', space=vmem, size = 0x1000, scoped, tag = 'output window, operand 0, single buffered']
    #allocation3 [shape = 's32[1]{0}', space=sflag, size = 0x4, scoped, tag = 'scoped memory for _forward_resident.1']
    %8 = vsyncpa [#allocation3], 0
    // Predicated region
    $region2: #{_forward_resident.1} parent=1 // pred_check
      _
    $region3: #{_forward_resident.1} parent=1 // pred_check_branch
      %10 = sbr.rel (0) target = $region5
    $region4: #{_forward_resident.1} parent=1 // pred_region
      _
    $region5: #{_forward_resident.1} parent=1 // pred_fallthru
      _
    // Predicated region
    $region6: #{_forward_resident.1} parent=1 // pred_check
      _
    $region7: #{_forward_resident.1} parent=1 // pred_check_branch
      %12 = sbr.rel (0) target = $region9
    $region8: #{_forward_resident.1} parent=1 // pred_region
      _
    $region9: #{_forward_resident.1} parent=1 // pred_fallthru
      _
    // Predicated region
    $region10: #{_forward_resident.1} parent=1 // pred_check
      _
    $region11: #{_forward_resident.1} parent=1 // pred_check_branch
      %14 = sbr.rel (0) target = $region13
    $region12: #{_forward_resident.1} parent=1 // pred_region
      _
    $region13: #{_forward_resident.1} parent=1 // pred_fallthru
      _
    %v15 = vld [vmem:[%s0] sm:$0xff]
    %v16 = vld [vmem:[%s1] sm:$0xff]
    %v17 = vld [vmem:[%s1 + $0x8] sm:$0xff]
    %v18 = vld [vmem:[%s1 + $0x10] sm:$0xff]
    %v19 = vld [vmem:[%s1 + $0x18] sm:$0xff]
    %v20 = vld [vmem:[%s1 + $0x20] sm:$0xff]
    %v21 = vld [vmem:[%s1 + $0x28] sm:$0xff]
    %v22 = vld [vmem:[%s1 + $0x30] sm:$0xff]
    %v23 = vld [vmem:[%s1 + $0x38] sm:$0xff]
    %v24 = vld [vmem:[%s1 + $0x40] sm:$0xff]
    %v25 = vld [vmem:[%s1 + $0x48] sm:$0xff]
    %v26 = vld [vmem:[%s1 + $0x50] sm:$0xff]
    %v27 = vld [vmem:[%s1 + $0x58] sm:$0xff]
    %v28 = vld [vmem:[%s1 + $0x60] sm:$0xff]
    %v29 = vld [vmem:[%s1 + $0x68] sm:$0xff]
    %v30 = vld [vmem:[%s1 + $0x70] sm:$0xff]
    %v31 = vld [vmem:[%s1 + $0x78] sm:$0xff]
    %v32 = vld [vmem:[%s2] sm:$0x1]
    %v34 = vperm.slane %v32, 0
    %36 = vmatpush.msra.mxu0 %v31
    %37 = vmatpush.msra.mxu0 %v30
    %38 = vmatpush.msra.mxu0 %v29
    %39 = vmatpush.msra.mxu0 %v28
    %40 = vmatpush.msra.mxu0 %v27
    %41 = vmatpush.msra.mxu0 %v26
    %42 = vmatpush.msra.mxu0 %v25
    %43 = vmatpush.msra.mxu0 %v24
    %44 = vmatpush.msra.mxu0 %v23
    %45 = vmatpush.msra.mxu0 %v22
    %46 = vmatpush.msra.mxu0 %v21
    %47 = vmatpush.msra.mxu0 %v20
    %48 = vmatpush.msra.mxu0 %v19
    %49 = vmatpush.msra.mxu0 %v18
    %50 = vmatpush.msra.mxu0 %v17
    %51 = vmatpush.msra.mxu0 %v16
    %52 = vmatmul.f32.gmra.mxu0 %v15
    %v53 = vpop.f32.mrf.mxu0
    %v54 = vadd.f32 %v34, %v53
    %55 = vdwg.mxu0
    %56 = vmax.xlane.f32.xlu0 %v54
    %v57 = vpop.xlane.xlu0 %56
    %v58 = vsub.f32 %v54, %v57
    %v59 = vmul.f32 %v58, 1.442695
    %v60 = vpow.pop %v59
    %61 = vadd.xlane.f32.xlu0 %v60
    %v62 = vpop.xlane.xlu0 %61
    %v63 = vlog2.pop %v62
    %v64 = vmul.f32 %v63, 0.6931472
    %v65 = vsub.f32 %v58, %v64
    %66 = vst [vmem:[#allocation2] sm:$0xff] %v65
    // Predicated region
    $region14: #{_forward_resident.1} parent=1 // pred_check
      _
    $region15: #{_forward_resident.1} parent=1 // pred_check_branch
      %68 = sbr.rel (0) target = $region17
    $region16: #{_forward_resident.1} parent=1 // pred_region
      %70 = vsyncadd [#allocation3], 0
      %s72 = sshll.u32 [#allocation2], 4
      %s73 = int_to_ptr.vmem [resolvable:$true] %s72
      %s74 = sshll.u32 %s3, 4
      %s75 = int_to_ptr.hbm [resolvable:$true] %s74
      %77 = dma.vmem_to_hbm [thread:$0]  %s73, 128, %s75, [#allocation3]
    $region17: #{_forward_resident.1} parent=1 // pred_fallthru
      _
    // Predicated region
    $region18: #{_forward_resident.1} parent=1 // pred_check
      _
    $region19: #{_forward_resident.1} parent=1 // pred_check_branch
      %79 = sbr.rel (0) target = $region21
    $region20: #{_forward_resident.1} parent=1 // pred_region
      %81 = dma.done [#allocation3], 128
    $region21: #{_forward_resident.1} parent=1 // pred_fallthru
      _
    %82 = vsyncpa [#allocation3], 1

</llo_original>
